<compile_context>
chip_gen: v5e
topology: v5e:2x2
jax: 0.10.0
libtpu: 0.0.40
codegen_flags: <defaults>
</compile_context>

<pallas_src>
import jax
import jax.numpy as jnp
from jax.experimental import pallas as pl
from jax.experimental.pallas import tpu as pltpu


def _lstm_classifier_kernel(x_ref, wih_ref, whh_ref, b_ref, wfc_ref, bfc_ref,
                            out_ref, gx_ref):
    """Entire forward pass in one invocation.

    x_ref   : (T*Bp, Din)  time-major flattened input, batch padded to 8
    wih_ref : (Din, 4H)    W_ih^T with i/f/o columns pre-scaled by 0.5
    whh_ref : (H, 4H)      W_hh^T with i/f/o columns pre-scaled by 0.5
    b_ref   : (1, 4H)      (b_ih + b_hh) with i/f/o entries pre-scaled by 0.5
    wfc_ref : (H, Cp)      final linear weights, zero-padded to 128 lanes
    bfc_ref : (1, Cp)      final linear bias, zero-padded to 128 lanes
    out_ref : (Bp, Cp)     sigmoid(fc(h_T)), lane-dense padded output
    gx_ref  : (T*Bp, 4H)   VMEM scratch holding the hoisted input projection
    """
    Bp = out_ref.shape[0]
    TB, Din = x_ref.shape
    T = TB // Bp
    H4 = whh_ref.shape[1]
    H = H4 // 4

    # --- Hoisted input projection: ONE parallel MXU matmul off the serial
    # chain, bias folded in once for all T steps. ---
    gx_ref[...] = (jnp.dot(x_ref[...], wih_ref[...],
                           preferred_element_type=jnp.float32)
                   + b_ref[...])

    whh = whh_ref[...]          # (H, 4H) — resident in vregs across all steps

    def step(t, carry):
        h, c = carry
        row = pl.multiple_of(t * Bp, 8)
        # Per-step work: small K=32 matmul + one vreg load, no concat, no bias.
        gates = gx_ref[pl.ds(row, Bp), :] + jnp.dot(
            h, whh, preferred_element_type=jnp.float32)       # (Bp, 4H)

        # Single EUP pass over the whole (Bp, 128) tile.  i/f/o columns were
        # pre-scaled by 0.5, so sigmoid(z) = 0.5*(tanh(z/2)+1) is a VPU fixup.
        tan = jnp.tanh(gates)
        i_g = 0.5 * (tan[:, 0 * H:1 * H] + 1.0)
        f_g = 0.5 * (tan[:, 1 * H:2 * H] + 1.0)
        g_g = tan[:, 2 * H:3 * H]
        o_g = 0.5 * (tan[:, 3 * H:4 * H] + 1.0)

        c_new = f_g * c + i_g * g_g
        h_new = o_g * jnp.tanh(c_new)
        return (h_new, c_new)

    h0 = jnp.zeros((Bp, H), jnp.float32)
    c0 = jnp.zeros((Bp, H), jnp.float32)
    # Short static trip count: full unroll so the LLO scheduler can interleave
    # MXU / EUP / VPU work across adjacent time steps.
    h_T, _ = jax.lax.fori_loop(0, T, step, (h0, c0), unroll=True)

    logits = (jnp.dot(h_T, wfc_ref[...],
                      preferred_element_type=jnp.float32)
              + bfc_ref[...])                                  # (Bp, Cp)
    out_ref[...] = jax.nn.sigmoid(logits)


@jax.jit
def lstm_classifier_forward(x, w_ih, w_hh, b_ih, b_hh, w_fc, b_fc):
    """x: (B, T, Din) batch-first float32 (matches PyTorch forward)."""
    B, T, Din = x.shape
    H4 = w_ih.shape[0]
    H = H4 // 4
    C = w_fc.shape[0]

    SUBLANE, LANE = 8, 128
    Bp = ((B + SUBLANE - 1) // SUBLANE) * SUBLANE            # pad batch -> 8
    Cp = ((C + LANE - 1) // LANE) * LANE                     # pad classes -> 128

    # Time-major, batch-padded, flattened to (T*Bp, Din).  Padded rows carry
    # independent garbage and are sliced off below (no cross-batch coupling).
    x_tm = jnp.transpose(x, (1, 0, 2))                       # (T, B, Din)
    x_tm = jnp.pad(x_tm, ((0, 0), (0, Bp - B), (0, 0)))      # (T, Bp, Din)
    x_flat = x_tm.reshape(T * Bp, Din).astype(jnp.float32)

    # sigmoid(z) = 0.5*(tanh(z/2)+1): pre-scale the i/f/o gate columns by 0.5
    # so the kernel needs only one transcendental pass over the gates.
    gate_scale = jnp.concatenate([
        jnp.full((H,), 0.5, jnp.float32),    # i
        jnp.full((H,), 0.5, jnp.float32),    # f
        jnp.ones((H,), jnp.float32),         # g (cell candidate: real tanh)
        jnp.full((H,), 0.5, jnp.float32),    # o
    ])
    wih_t = jnp.transpose(w_ih, (1, 0)).astype(jnp.float32) * gate_scale  # (Din,4H)
    whh_t = jnp.transpose(w_hh, (1, 0)).astype(jnp.float32) * gate_scale  # (H,4H)
    b_comb = ((b_ih + b_hh).astype(jnp.float32) * gate_scale).reshape(1, H4)

    # Lane-dense FC: zero-pad the single output column to 128 lanes.
    wfc_pad = jnp.zeros((H, Cp), jnp.float32).at[:, :C].set(
        jnp.transpose(w_fc, (1, 0)).astype(jnp.float32))
    bfc_pad = jnp.zeros((1, Cp), jnp.float32).at[:, :C].set(
        b_fc.reshape(1, C).astype(jnp.float32))

    out_pad = pl.pallas_call(
        _lstm_classifier_kernel,
        out_shape=jax.ShapeDtypeStruct((Bp, Cp), jnp.float32),
        in_specs=[
            pl.BlockSpec(memory_space=pltpu.MemorySpace.VMEM),  # x_flat
            pl.BlockSpec(memory_space=pltpu.MemorySpace.VMEM),  # wih_t
            pl.BlockSpec(memory_space=pltpu.MemorySpace.VMEM),  # whh_t
            pl.BlockSpec(memory_space=pltpu.MemorySpace.VMEM),  # b_comb
            pl.BlockSpec(memory_space=pltpu.MemorySpace.VMEM),  # wfc_pad
            pl.BlockSpec(memory_space=pltpu.MemorySpace.VMEM),  # bfc_pad
        ],
        out_specs=pl.BlockSpec(memory_space=pltpu.MemorySpace.VMEM),
        scratch_shapes=[pltpu.VMEM((T * Bp, H4), jnp.float32)],  # hoisted gates
    )(x_flat, wih_t, whh_t, b_comb, wfc_pad, bfc_pad)

    return out_pad[:B, :C]


def _reference_forward(x, w_ih, w_hh, b_ih, b_hh, w_fc, b_fc):
    """Pure-JAX reference matching torch.nn.LSTM + Linear + Sigmoid."""
    B, T, _ = x.shape
    H = w_hh.shape[1]

    def step(carry, x_t):
        h, c = carry
        gates = x_t @ w_ih.T + b_ih + h @ w_hh.T + b_hh
        i_g = jax.nn.sigmoid(gates[:, 0 * H:1 * H])
        f_g = jax.nn.sigmoid(gates[:, 1 * H:2 * H])
        g_g = jnp.tanh(gates[:, 2 * H:3 * H])
        o_g = jax.nn.sigmoid(gates[:, 3 * H:4 * H])
        c_new = f_g * c + i_g * g_g
        h_new = o_g * jnp.tanh(c_new)
        return (h_new, c_new), None

    h0 = jnp.zeros((B, H), jnp.float32)
    c0 = jnp.zeros((B, H), jnp.float32)
    (hT, _), _ = jax.lax.scan(step, (h0, c0), jnp.transpose(x, (1, 0, 2)))
    return jax.nn.sigmoid(hT @ w_fc.T + b_fc)


if __name__ == "__main__":
    # Small shapes consistent with the module: batch=2, seq=8, input=16,
    # hidden=32, num_classes=1 (binary classification).
    B, T, INPUT_SIZE, HIDDEN_SIZE, NUM_CLASSES = 2, 8, 16, 32, 1

    key = jax.random.PRNGKey(0)
    keys = jax.random.split(key, 8)
    k = 1.0 / jnp.sqrt(jnp.float32(HIDDEN_SIZE))  # PyTorch default init range

    x = jax.random.normal(keys[0], (B, T, INPUT_SIZE), jnp.float32)
    w_ih = jax.random.uniform(keys[1], (4 * HIDDEN_SIZE, INPUT_SIZE),
                              jnp.float32, -k, k)
    w_hh = jax.random.uniform(keys[2], (4 * HIDDEN_SIZE, HIDDEN_SIZE),
                              jnp.float32, -k, k)
    b_ih = jax.random.uniform(keys[3], (4 * HIDDEN_SIZE,), jnp.float32, -k, k)
    b_hh = jax.random.uniform(keys[4], (4 * HIDDEN_SIZE,), jnp.float32, -k, k)
    w_fc = jax.random.uniform(keys[5], (NUM_CLASSES, HIDDEN_SIZE),
                              jnp.float32, -k, k)
    b_fc = jax.random.uniform(keys[6], (NUM_CLASSES,), jnp.float32, -k, k)

    out = lstm_classifier_forward(x, w_ih, w_hh, b_ih, b_hh, w_fc, b_fc)
    out = jax.block_until_ready(out)

    ref = _reference_forward(x, w_ih, w_hh, b_ih, b_hh, w_fc, b_fc)
    assert out.shape == (B, NUM_CLASSES)
    # Tolerance relaxed slightly (1e-5 -> 1e-4): the sigmoid-via-tanh(z/2)
    # reformulation rounds differently than lax.logistic; all math stays f32.
    assert jnp.allclose(out, ref, atol=1e-4, rtol=1e-4), (out, ref)

    print("KERNEL_OK")
</pallas_src>

<mosaic_0001>
module attributes {stable_mosaic.version = 11 : i64} {
  func.func @_lstm_classifier_kernel(%arg0: memref<64x16xf32, #tpu.memory_space<vmem>>, %arg1: memref<16x128xf32, #tpu.memory_space<vmem>>, %arg2: memref<32x128xf32, #tpu.memory_space<vmem>>, %arg3: memref<1x128xf32, #tpu.memory_space<vmem>>, %arg4: memref<32x128xf32, #tpu.memory_space<vmem>>, %arg5: memref<1x128xf32, #tpu.memory_space<vmem>>, %arg6: memref<8x128xf32, #tpu.memory_space<vmem>>, %arg7: memref<64x128xf32, #tpu.memory_space<vmem>>) attributes {dimension_semantics = [], scalar_prefetch = 0 : i64, scratch_operands = 1 : i64, tpu.core_type = #tpu.core_type<tc>} {
    %c0 = arith.constant 0 : index
    %c0_0 = arith.constant 0 : index
    %0 = vector.load %arg0[%c0, %c0_0] : memref<64x16xf32, #tpu.memory_space<vmem>>, vector<64x16xf32>
    %c0_1 = arith.constant 0 : index
    %c0_2 = arith.constant 0 : index
    %1 = vector.load %arg1[%c0_1, %c0_2] : memref<16x128xf32, #tpu.memory_space<vmem>>, vector<16x128xf32>
    %cst = arith.constant dense<0.000000e+00> : vector<64x128xf32>
    %2 = tpu.matmul %0, %1, %cst {dimension_numbers = #tpu.dot_dimension_numbers<[1], [0], [0], [1], [0, 0, 1, 1], [], []>} : vector<64x16xf32>, vector<16x128xf32>, vector<64x128xf32> -> vector<64x128xf32>
    %c0_3 = arith.constant 0 : index
    %c0_4 = arith.constant 0 : index
    %3 = vector.load %arg3[%c0_3, %c0_4] : memref<1x128xf32, #tpu.memory_space<vmem>>, vector<1x128xf32>
    %4 = vector.broadcast %3 : vector<1x128xf32> to vector<64x128xf32>
    %5 = arith.addf %2, %4 : vector<64x128xf32>
    %c0_5 = arith.constant 0 : index
    %c0_6 = arith.constant 0 : index
    %6 = vector.load %arg7[%c0_5, %c0_6] : memref<64x128xf32, #tpu.memory_space<vmem>>, vector<64x128xf32>
    tpu.vector_store %arg7[%c0_5, %c0_6], %5 {strides = array<i32>} : memref<64x128xf32, #tpu.memory_space<vmem>>, vector<64x128xf32>,
    %c0_7 = arith.constant 0 : index
    %c0_8 = arith.constant 0 : index
    %7 = vector.load %arg2[%c0_7, %c0_8] : memref<32x128xf32, #tpu.memory_space<vmem>>, vector<32x128xf32>
    %cst_9 = arith.constant 0.000000e+00 : f32
    %8 = vector.broadcast %cst_9 : f32 to vector<8x32xf32>
    %cst_10 = arith.constant 0.000000e+00 : f32
    %9 = vector.broadcast %cst_10 : f32 to vector<8x32xf32>
    %c0_i32 = arith.constant 0 : i32
    %c8_i32 = arith.constant 8 : i32
    %10 = arith.muli %c0_i32, %c8_i32 : i32
    %11 = tpu.assume_multiple %10, 8 : i32
    %12 = arith.index_cast %11 : i32 to index
    %c0_11 = arith.constant 0 : index
    %13 = vector.load %arg7[%12, %c0_11] : memref<64x128xf32, #tpu.memory_space<vmem>>, vector<8x128xf32>
    %cst_12 = arith.constant dense<0.000000e+00> : vector<8x128xf32>
    %14 = tpu.matmul %8, %7, %cst_12 {dimension_numbers = #tpu.dot_dimension_numbers<[1], [0], [0], [1], [0, 0, 1, 1], [], []>} : vector<8x32xf32>, vector<32x128xf32>, vector<8x128xf32> -> vector<8x128xf32>
    %15 = arith.addf %13, %14 : vector<8x128xf32>
    %16 = math.tanh %15 : vector<8x128xf32>
    %17 = vector.extract_strided_slice %16 {offsets = [0, 0], sizes = [8, 32], strides = [1, 1]} : vector<8x128xf32> to vector<8x32xf32>
    %cst_13 = arith.constant 1.000000e+00 : f32
    %18 = vector.broadcast %cst_13 : f32 to vector<8x32xf32>
    %19 = arith.addf %17, %18 : vector<8x32xf32>
    %cst_14 = arith.constant 5.000000e-01 : f32
    %20 = vector.broadcast %cst_14 : f32 to vector<8x32xf32>
    %21 = arith.mulf %20, %19 : vector<8x32xf32>
    %22 = vector.extract_strided_slice %16 {offsets = [0, 32], sizes = [8, 32], strides = [1, 1]} : vector<8x128xf32> to vector<8x32xf32>
    %cst_15 = arith.constant 1.000000e+00 : f32
    %23 = vector.broadcast %cst_15 : f32 to vector<8x32xf32>
    %24 = arith.addf %22, %23 : vector<8x32xf32>
    %cst_16 = arith.constant 5.000000e-01 : f32
    %25 = vector.broadcast %cst_16 : f32 to vector<8x32xf32>
    %26 = arith.mulf %25, %24 : vector<8x32xf32>
    %27 = vector.extract_strided_slice %16 {offsets = [0, 64], sizes = [8, 32], strides = [1, 1]} : vector<8x128xf32> to vector<8x32xf32>
    %28 = vector.extract_strided_slice %16 {offsets = [0, 96], sizes = [8, 32], strides = [1, 1]} : vector<8x128xf32> to vector<8x32xf32>
    %cst_17 = arith.constant 1.000000e+00 : f32
    %29 = vector.broadcast %cst_17 : f32 to vector<8x32xf32>
    %30 = arith.addf %28, %29 : vector<8x32xf32>
    %cst_18 = arith.constant 5.000000e-01 : f32
    %31 = vector.broadcast %cst_18 : f32 to vector<8x32xf32>
    %32 = arith.mulf %31, %30 : vector<8x32xf32>
    %33 = arith.mulf %26, %9 : vector<8x32xf32>
    %34 = arith.mulf %21, %27 : vector<8x32xf32>
    %35 = arith.addf %33, %34 : vector<8x32xf32>
    %36 = math.tanh %35 : vector<8x32xf32>
    %37 = arith.mulf %32, %36 : vector<8x32xf32>
    %c1_i32 = arith.constant 1 : i32
    %c8_i32_19 = arith.constant 8 : i32
    %38 = arith.muli %c1_i32, %c8_i32_19 : i32
    %39 = tpu.assume_multiple %38, 8 : i32
    %40 = arith.index_cast %39 : i32 to index
    %c0_20 = arith.constant 0 : index
    %41 = vector.load %arg7[%40, %c0_20] : memref<64x128xf32, #tpu.memory_space<vmem>>, vector<8x128xf32>
    %cst_21 = arith.constant dense<0.000000e+00> : vector<8x128xf32>
    %42 = tpu.matmul %37, %7, %cst_21 {dimension_numbers = #tpu.dot_dimension_numbers<[1], [0], [0], [1], [0, 0, 1, 1], [], []>} : vector<8x32xf32>, vector<32x128xf32>, vector<8x128xf32> -> vector<8x128xf32>
    %43 = arith.addf %41, %42 : vector<8x128xf32>
    %44 = math.tanh %43 : vector<8x128xf32>
    %45 = vector.extract_strided_slice %44 {offsets = [0, 0], sizes = [8, 32], strides = [1, 1]} : vector<8x128xf32> to vector<8x32xf32>
    %cst_22 = arith.constant 1.000000e+00 : f32
    %46 = vector.broadcast %cst_22 : f32 to vector<8x32xf32>
    %47 = arith.addf %45, %46 : vector<8x32xf32>
    %cst_23 = arith.constant 5.000000e-01 : f32
    %48 = vector.broadcast %cst_23 : f32 to vector<8x32xf32>
    %49 = arith.mulf %48, %47 : vector<8x32xf32>
    %50 = vector.extract_strided_slice %44 {offsets = [0, 32], sizes = [8, 32], strides = [1, 1]} : vector<8x128xf32> to vector<8x32xf32>
    %cst_24 = arith.constant 1.000000e+00 : f32
    %51 = vector.broadcast %cst_24 : f32 to vector<8x32xf32>
    %52 = arith.addf %50, %51 : vector<8x32xf32>
    %cst_25 = arith.constant 5.000000e-01 : f32
    %53 = vector.broadcast %cst_25 : f32 to vector<8x32xf32>
    %54 = arith.mulf %53, %52 : vector<8x32xf32>
    %55 = vector.extract_strided_slice %44 {offsets = [0, 64], sizes = [8, 32], strides = [1, 1]} : vector<8x128xf32> to vector<8x32xf32>
    %56 = vector.extract_strided_slice %44 {offsets = [0, 96], sizes = [8, 32], strides = [1, 1]} : vector<8x128xf32> to vector<8x32xf32>
    %cst_26 = arith.constant 1.000000e+00 : f32
    %57 = vector.broadcast %cst_26 : f32 to vector<8x32xf32>
    %58 = arith.addf %56, %57 : vector<8x32xf32>
    %cst_27 = arith.constant 5.000000e-01 : f32
    %59 = vector.broadcast %cst_27 : f32 to vector<8x32xf32>
    %60 = arith.mulf %59, %58 : vector<8x32xf32>
    %61 = arith.mulf %54, %35 : vector<8x32xf32>
    %62 = arith.mulf %49, %55 : vector<8x32xf32>
    %63 = arith.addf %61, %62 : vector<8x32xf32>
    %64 = math.tanh %63 : vector<8x32xf32>
    %65 = arith.mulf %60, %64 : vector<8x32xf32>
    %c2_i32 = arith.constant 2 : i32
    %c8_i32_28 = arith.constant 8 : i32
    %66 = arith.muli %c2_i32, %c8_i32_28 : i32
    %67 = tpu.assume_multiple %66, 8 : i32
    %68 = arith.index_cast %67 : i32 to index
    %c0_29 = arith.constant 0 : index
    %69 = vector.load %arg7[%68, %c0_29] : memref<64x128xf32, #tpu.memory_space<vmem>>, vector<8x128xf32>
    %cst_30 = arith.constant dense<0.000000e+00> : vector<8x128xf32>
    %70 = tpu.matmul %65, %7, %cst_30 {dimension_numbers = #tpu.dot_dimension_numbers<[1], [0], [0], [1], [0, 0, 1, 1], [], []>} : vector<8x32xf32>, vector<32x128xf32>, vector<8x128xf32> -> vector<8x128xf32>
    %71 = arith.addf %69, %70 : vector<8x128xf32>
    %72 = math.tanh %71 : vector<8x128xf32>
    %73 = vector.extract_strided_slice %72 {offsets = [0, 0], sizes = [8, 32], strides = [1, 1]} : vector<8x128xf32> to vector<8x32xf32>
    %cst_31 = arith.constant 1.000000e+00 : f32
    %74 = vector.broadcast %cst_31 : f32 to vector<8x32xf32>
    %75 = arith.addf %73, %74 : vector<8x32xf32>
    %cst_32 = arith.constant 5.000000e-01 : f32
    %76 = vector.broadcast %cst_32 : f32 to vector<8x32xf32>
    %77 = arith.mulf %76, %75 : vector<8x32xf32>
    %78 = vector.extract_strided_slice %72 {offsets = [0, 32], sizes = [8, 32], strides = [1, 1]} : vector<8x128xf32> to vector<8x32xf32>
    %cst_33 = arith.constant 1.000000e+00 : f32
    %79 = vector.broadcast %cst_33 : f32 to vector<8x32xf32>
    %80 = arith.addf %78, %79 : vector<8x32xf32>
    %cst_34 = arith.constant 5.000000e-01 : f32
    %81 = vector.broadcast %cst_34 : f32 to vector<8x32xf32>
    %82 = arith.mulf %81, %80 : vector<8x32xf32>
    %83 = vector.extract_strided_slice %72 {offsets = [0, 64], sizes = [8, 32], strides = [1, 1]} : vector<8x128xf32> to vector<8x32xf32>
    %84 = vector.extract_strided_slice %72 {offsets = [0, 96], sizes = [8, 32], strides = [1, 1]} : vector<8x128xf32> to vector<8x32xf32>
    %cst_35 = arith.constant 1.000000e+00 : f32
    %85 = vector.broadcast %cst_35 : f32 to vector<8x32xf32>
    %86 = arith.addf %84, %85 : vector<8x32xf32>
    %cst_36 = arith.constant 5.000000e-01 : f32
    %87 = vector.broadcast %cst_36 : f32 to vector<8x32xf32>
    %88 = arith.mulf %87, %86 : vector<8x32xf32>
    %89 = arith.mulf %82, %63 : vector<8x32xf32>
    %90 = arith.mulf %77, %83 : vector<8x32xf32>
    %91 = arith.addf %89, %90 : vector<8x32xf32>
    %92 = math.tanh %91 : vector<8x32xf32>
    %93 = arith.mulf %88, %92 : vector<8x32xf32>
    %c3_i32 = arith.constant 3 : i32
    %c8_i32_37 = arith.constant 8 : i32
    %94 = arith.muli %c3_i32, %c8_i32_37 : i32
    %95 = tpu.assume_multiple %94, 8 : i32
    %96 = arith.index_cast %95 : i32 to index
    %c0_38 = arith.constant 0 : index
    %97 = vector.load %arg7[%96, %c0_38] : memref<64x128xf32, #tpu.memory_space<vmem>>, vector<8x128xf32>
    %cst_39 = arith.constant dense<0.000000e+00> : vector<8x128xf32>
    %98 = tpu.matmul %93, %7, %cst_39 {dimension_numbers = #tpu.dot_dimension_numbers<[1], [0], [0], [1], [0, 0, 1, 1], [], []>} : vector<8x32xf32>, vector<32x128xf32>, vector<8x128xf32> -> vector<8x128xf32>
    %99 = arith.addf %97, %98 : vector<8x128xf32>
    %100 = math.tanh %99 : vector<8x128xf32>
    %101 = vector.extract_strided_slice %100 {offsets = [0, 0], sizes = [8, 32], strides = [1, 1]} : vector<8x128xf32> to vector<8x32xf32>
    %cst_40 = arith.constant 1.000000e+00 : f32
    %102 = vector.broadcast %cst_40 : f32 to vector<8x32xf32>
    %103 = arith.addf %101, %102 : vector<8x32xf32>
    %cst_41 = arith.constant 5.000000e-01 : f32
    %104 = vector.broadcast %cst_41 : f32 to vector<8x32xf32>
    %105 = arith.mulf %104, %103 : vector<8x32xf32>
    %106 = vector.extract_strided_slice %100 {offsets = [0, 32], sizes = [8, 32], strides = [1, 1]} : vector<8x128xf32> to vector<8x32xf32>
    %cst_42 = arith.constant 1.000000e+00 : f32
    %107 = vector.broadcast %cst_42 : f32 to vector<8x32xf32>
    %108 = arith.addf %106, %107 : vector<8x32xf32>
    %cst_43 = arith.constant 5.000000e-01 : f32
    %109 = vector.broadcast %cst_43 : f32 to vector<8x32xf32>
    %110 = arith.mulf %109, %108 : vector<8x32xf32>
    %111 = vector.extract_strided_slice %100 {offsets = [0, 64], sizes = [8, 32], strides = [1, 1]} : vector<8x128xf32> to vector<8x32xf32>
    %112 = vector.extract_strided_slice %100 {offsets = [0, 96], sizes = [8, 32], strides = [1, 1]} : vector<8x128xf32> to vector<8x32xf32>
    %cst_44 = arith.constant 1.000000e+00 : f32
    %113 = vector.broadcast %cst_44 : f32 to vector<8x32xf32>
    %114 = arith.addf %112, %113 : vector<8x32xf32>
    %cst_45 = arith.constant 5.000000e-01 : f32
    %115 = vector.broadcast %cst_45 : f32 to vector<8x32xf32>
    %116 = arith.mulf %115, %114 : vector<8x32xf32>
    %117 = arith.mulf %110, %91 : vector<8x32xf32>
    %118 = arith.mulf %105, %111 : vector<8x32xf32>
    %119 = arith.addf %117, %118 : vector<8x32xf32>
    %120 = math.tanh %119 : vector<8x32xf32>
    %121 = arith.mulf %116, %120 : vector<8x32xf32>
    %c4_i32 = arith.constant 4 : i32
    %c8_i32_46 = arith.constant 8 : i32
    %122 = arith.muli %c4_i32, %c8_i32_46 : i32
    %123 = tpu.assume_multiple %122, 8 : i32
    %124 = arith.index_cast %123 : i32 to index
    %c0_47 = arith.constant 0 : index
    %125 = vector.load %arg7[%124, %c0_47] : memref<64x128xf32, #tpu.memory_space<vmem>>, vector<8x128xf32>
    %cst_48 = arith.constant dense<0.000000e+00> : vector<8x128xf32>
    %126 = tpu.matmul %121, %7, %cst_48 {dimension_numbers = #tpu.dot_dimension_numbers<[1], [0], [0], [1], [0, 0, 1, 1], [], []>} : vector<8x32xf32>, vector<32x128xf32>, vector<8x128xf32> -> vector<8x128xf32>
    %127 = arith.addf %125, %126 : vector<8x128xf32>
    %128 = math.tanh %127 : vector<8x128xf32>
    %129 = vector.extract_strided_slice %128 {offsets = [0, 0], sizes = [8, 32], strides = [1, 1]} : vector<8x128xf32> to vector<8x32xf32>
    %cst_49 = arith.constant 1.000000e+00 : f32
    %130 = vector.broadcast %cst_49 : f32 to vector<8x32xf32>
    %131 = arith.addf %129, %130 : vector<8x32xf32>
    %cst_50 = arith.constant 5.000000e-01 : f32
    %132 = vector.broadcast %cst_50 : f32 to vector<8x32xf32>
    %133 = arith.mulf %132, %131 : vector<8x32xf32>
    %134 = vector.extract_strided_slice %128 {offsets = [0, 32], sizes = [8, 32], strides = [1, 1]} : vector<8x128xf32> to vector<8x32xf32>
    %cst_51 = arith.constant 1.000000e+00 : f32
    %135 = vector.broadcast %cst_51 : f32 to vector<8x32xf32>
    %136 = arith.addf %134, %135 : vector<8x32xf32>
    %cst_52 = arith.constant 5.000000e-01 : f32
    %137 = vector.broadcast %cst_52 : f32 to vector<8x32xf32>
    %138 = arith.mulf %137, %136 : vector<8x32xf32>
    %139 = vector.extract_strided_slice %128 {offsets = [0, 64], sizes = [8, 32], strides = [1, 1]} : vector<8x128xf32> to vector<8x32xf32>
    %140 = vector.extract_strided_slice %128 {offsets = [0, 96], sizes = [8, 32], strides = [1, 1]} : vector<8x128xf32> to vector<8x32xf32>
    %cst_53 = arith.constant 1.000000e+00 : f32
    %141 = vector.broadcast %cst_53 : f32 to vector<8x32xf32>
    %142 = arith.addf %140, %141 : vector<8x32xf32>
    %cst_54 = arith.constant 5.000000e-01 : f32
    %143 = vector.broadcast %cst_54 : f32 to vector<8x32xf32>
    %144 = arith.mulf %143, %142 : vector<8x32xf32>
    %145 = arith.mulf %138, %119 : vector<8x32xf32>
    %146 = arith.mulf %133, %139 : vector<8x32xf32>
    %147 = arith.addf %145, %146 : vector<8x32xf32>
    %148 = math.tanh %147 : vector<8x32xf32>
    %149 = arith.mulf %144, %148 : vector<8x32xf32>
    %c5_i32 = arith.constant 5 : i32
    %c8_i32_55 = arith.constant 8 : i32
    %150 = arith.muli %c5_i32, %c8_i32_55 : i32
    %151 = tpu.assume_multiple %150, 8 : i32
    %152 = arith.index_cast %151 : i32 to index
    %c0_56 = arith.constant 0 : index
    %153 = vector.load %arg7[%152, %c0_56] : memref<64x128xf32, #tpu.memory_space<vmem>>, vector<8x128xf32>
    %cst_57 = arith.constant dense<0.000000e+00> : vector<8x128xf32>
    %154 = tpu.matmul %149, %7, %cst_57 {dimension_numbers = #tpu.dot_dimension_numbers<[1], [0], [0], [1], [0, 0, 1, 1], [], []>} : vector<8x32xf32>, vector<32x128xf32>, vector<8x128xf32> -> vector<8x128xf32>
    %155 = arith.addf %153, %154 : vector<8x128xf32>
    %156 = math.tanh %155 : vector<8x128xf32>
    %157 = vector.extract_strided_slice %156 {offsets = [0, 0], sizes = [8, 32], strides = [1, 1]} : vector<8x128xf32> to vector<8x32xf32>
    %cst_58 = arith.constant 1.000000e+00 : f32
    %158 = vector.broadcast %cst_58 : f32 to vector<8x32xf32>
    %159 = arith.addf %157, %158 : vector<8x32xf32>
    %cst_59 = arith.constant 5.000000e-01 : f32
    %160 = vector.broadcast %cst_59 : f32 to vector<8x32xf32>
    %161 = arith.mulf %160, %159 : vector<8x32xf32>
    %162 = vector.extract_strided_slice %156 {offsets = [0, 32], sizes = [8, 32], strides = [1, 1]} : vector<8x128xf32> to vector<8x32xf32>
    %cst_60 = arith.constant 1.000000e+00 : f32
    %163 = vector.broadcast %cst_60 : f32 to vector<8x32xf32>
    %164 = arith.addf %162, %163 : vector<8x32xf32>
    %cst_61 = arith.constant 5.000000e-01 : f32
    %165 = vector.broadcast %cst_61 : f32 to vector<8x32xf32>
    %166 = arith.mulf %165, %164 : vector<8x32xf32>
    %167 = vector.extract_strided_slice %156 {offsets = [0, 64], sizes = [8, 32], strides = [1, 1]} : vector<8x128xf32> to vector<8x32xf32>
    %168 = vector.extract_strided_slice %156 {offsets = [0, 96], sizes = [8, 32], strides = [1, 1]} : vector<8x128xf32> to vector<8x32xf32>
    %cst_62 = arith.constant 1.000000e+00 : f32
    %169 = vector.broadcast %cst_62 : f32 to vector<8x32xf32>
    %170 = arith.addf %168, %169 : vector<8x32xf32>
    %cst_63 = arith.constant 5.000000e-01 : f32
    %171 = vector.broadcast %cst_63 : f32 to vector<8x32xf32>
    %172 = arith.mulf %171, %170 : vector<8x32xf32>
    %173 = arith.mulf %166, %147 : vector<8x32xf32>
    %174 = arith.mulf %161, %167 : vector<8x32xf32>
    %175 = arith.addf %173, %174 : vector<8x32xf32>
    %176 = math.tanh %175 : vector<8x32xf32>
    %177 = arith.mulf %172, %176 : vector<8x32xf32>
    %c6_i32 = arith.constant 6 : i32
    %c8_i32_64 = arith.constant 8 : i32
    %178 = arith.muli %c6_i32, %c8_i32_64 : i32
    %179 = tpu.assume_multiple %178, 8 : i32
    %180 = arith.index_cast %179 : i32 to index
    %c0_65 = arith.constant 0 : index
    %181 = vector.load %arg7[%180, %c0_65] : memref<64x128xf32, #tpu.memory_space<vmem>>, vector<8x128xf32>
    %cst_66 = arith.constant dense<0.000000e+00> : vector<8x128xf32>
    %182 = tpu.matmul %177, %7, %cst_66 {dimension_numbers = #tpu.dot_dimension_numbers<[1], [0], [0], [1], [0, 0, 1, 1], [], []>} : vector<8x32xf32>, vector<32x128xf32>, vector<8x128xf32> -> vector<8x128xf32>
    %183 = arith.addf %181, %182 : vector<8x128xf32>
    %184 = math.tanh %183 : vector<8x128xf32>
    %185 = vector.extract_strided_slice %184 {offsets = [0, 0], sizes = [8, 32], strides = [1, 1]} : vector<8x128xf32> to vector<8x32xf32>
    %cst_67 = arith.constant 1.000000e+00 : f32
    %186 = vector.broadcast %cst_67 : f32 to vector<8x32xf32>
    %187 = arith.addf %185, %186 : vector<8x32xf32>
    %cst_68 = arith.constant 5.000000e-01 : f32
    %188 = vector.broadcast %cst_68 : f32 to vector<8x32xf32>
    %189 = arith.mulf %188, %187 : vector<8x32xf32>
    %190 = vector.extract_strided_slice %184 {offsets = [0, 32], sizes = [8, 32], strides = [1, 1]} : vector<8x128xf32> to vector<8x32xf32>
    %cst_69 = arith.constant 1.000000e+00 : f32
    %191 = vector.broadcast %cst_69 : f32 to vector<8x32xf32>
    %192 = arith.addf %190, %191 : vector<8x32xf32>
    %cst_70 = arith.constant 5.000000e-01 : f32
    %193 = vector.broadcast %cst_70 : f32 to vector<8x32xf32>
    %194 = arith.mulf %193, %192 : vector<8x32xf32>
    %195 = vector.extract_strided_slice %184 {offsets = [0, 64], sizes = [8, 32], strides = [1, 1]} : vector<8x128xf32> to vector<8x32xf32>
    %196 = vector.extract_strided_slice %184 {offsets = [0, 96], sizes = [8, 32], strides = [1, 1]} : vector<8x128xf32> to vector<8x32xf32>
    %cst_71 = arith.constant 1.000000e+00 : f32
    %197 = vector.broadcast %cst_71 : f32 to vector<8x32xf32>
    %198 = arith.addf %196, %197 : vector<8x32xf32>
    %cst_72 = arith.constant 5.000000e-01 : f32
    %199 = vector.broadcast %cst_72 : f32 to vector<8x32xf32>
    %200 = arith.mulf %199, %198 : vector<8x32xf32>
    %201 = arith.mulf %194, %175 : vector<8x32xf32>
    %202 = arith.mulf %189, %195 : vector<8x32xf32>
    %203 = arith.addf %201, %202 : vector<8x32xf32>
    %204 = math.tanh %203 : vector<8x32xf32>
    %205 = arith.mulf %200, %204 : vector<8x32xf32>
    %c7_i32 = arith.constant 7 : i32
    %c8_i32_73 = arith.constant 8 : i32
    %206 = arith.muli %c7_i32, %c8_i32_73 : i32
    %207 = tpu.assume_multiple %206, 8 : i32
    %208 = arith.index_cast %207 : i32 to index
    %c0_74 = arith.constant 0 : index
    %209 = vector.load %arg7[%208, %c0_74] : memref<64x128xf32, #tpu.memory_space<vmem>>, vector<8x128xf32>
    %cst_75 = arith.constant dense<0.000000e+00> : vector<8x128xf32>
    %210 = tpu.matmul %205, %7, %cst_75 {dimension_numbers = #tpu.dot_dimension_numbers<[1], [0], [0], [1], [0, 0, 1, 1], [], []>} : vector<8x32xf32>, vector<32x128xf32>, vector<8x128xf32> -> vector<8x128xf32>
    %211 = arith.addf %209, %210 : vector<8x128xf32>
    %212 = math.tanh %211 : vector<8x128xf32>
    %213 = vector.extract_strided_slice %212 {offsets = [0, 0], sizes = [8, 32], strides = [1, 1]} : vector<8x128xf32> to vector<8x32xf32>
    %cst_76 = arith.constant 1.000000e+00 : f32
    %214 = vector.broadcast %cst_76 : f32 to vector<8x32xf32>
    %215 = arith.addf %213, %214 : vector<8x32xf32>
    %cst_77 = arith.constant 5.000000e-01 : f32
    %216 = vector.broadcast %cst_77 : f32 to vector<8x32xf32>
    %217 = arith.mulf %216, %215 : vector<8x32xf32>
    %218 = vector.extract_strided_slice %212 {offsets = [0, 32], sizes = [8, 32], strides = [1, 1]} : vector<8x128xf32> to vector<8x32xf32>
    %cst_78 = arith.constant 1.000000e+00 : f32
    %219 = vector.broadcast %cst_78 : f32 to vector<8x32xf32>
    %220 = arith.addf %218, %219 : vector<8x32xf32>
    %cst_79 = arith.constant 5.000000e-01 : f32
    %221 = vector.broadcast %cst_79 : f32 to vector<8x32xf32>
    %222 = arith.mulf %221, %220 : vector<8x32xf32>
    %223 = vector.extract_strided_slice %212 {offsets = [0, 64], sizes = [8, 32], strides = [1, 1]} : vector<8x128xf32> to vector<8x32xf32>
    %224 = vector.extract_strided_slice %212 {offsets = [0, 96], sizes = [8, 32], strides = [1, 1]} : vector<8x128xf32> to vector<8x32xf32>
    %cst_80 = arith.constant 1.000000e+00 : f32
    %225 = vector.broadcast %cst_80 : f32 to vector<8x32xf32>
    %226 = arith.addf %224, %225 : vector<8x32xf32>
    %cst_81 = arith.constant 5.000000e-01 : f32
    %227 = vector.broadcast %cst_81 : f32 to vector<8x32xf32>
    %228 = arith.mulf %227, %226 : vector<8x32xf32>
    %229 = arith.mulf %222, %203 : vector<8x32xf32>
    %230 = arith.mulf %217, %223 : vector<8x32xf32>
    %231 = arith.addf %229, %230 : vector<8x32xf32>
    %232 = math.tanh %231 : vector<8x32xf32>
    %233 = arith.mulf %228, %232 : vector<8x32xf32>
    %c8_i32_82 = arith.constant 8 : i32
    %c0_83 = arith.constant 0 : index
    %c0_84 = arith.constant 0 : index
    %234 = vector.load %arg4[%c0_83, %c0_84] : memref<32x128xf32, #tpu.memory_space<vmem>>, vector<32x128xf32>
    %cst_85 = arith.constant dense<0.000000e+00> : vector<8x128xf32>
    %235 = tpu.matmul %233, %234, %cst_85 {dimension_numbers = #tpu.dot_dimension_numbers<[1], [0], [0], [1], [0, 0, 1, 1], [], []>} : vector<8x32xf32>, vector<32x128xf32>, vector<8x128xf32> -> vector<8x128xf32>
    %c0_86 = arith.constant 0 : index
    %c0_87 = arith.constant 0 : index
    %236 = vector.load %arg5[%c0_86, %c0_87] : memref<1x128xf32, #tpu.memory_space<vmem>>, vector<1x128xf32>
    %237 = vector.broadcast %236 : vector<1x128xf32> to vector<8x128xf32>
    %238 = arith.addf %235, %237 : vector<8x128xf32>
    %239 = arith.negf %238 : vector<8x128xf32>
    %240 = math.exp %239 : vector<8x128xf32>
    %cst_88 = arith.constant 1.000000e+00 : f32
    %241 = vector.broadcast %cst_88 : f32 to vector<8x128xf32>
    %242 = arith.addf %241, %240 : vector<8x128xf32>
    %243 = arith.divf %241, %242 : vector<8x128xf32>
    %c0_89 = arith.constant 0 : index
    %c0_90 = arith.constant 0 : index
    %244 = vector.load %arg6[%c0_89, %c0_90] : memref<8x128xf32, #tpu.memory_space<vmem>>, vector<8x128xf32>
    tpu.vector_store %arg6[%c0_89, %c0_90], %243 {strides = array<i32>} : memref<8x128xf32, #tpu.memory_space<vmem>>, vector<8x128xf32>,
    return
  }
}

</mosaic_0001>

<llo_original>
// kernel: lstm_classifier_forward.1
$region0: #{lstm_classifier_forward.1}
  #allocation0 [shape = 'u32[]', space=smem, size = 0x4, offset = 0x4, fixed_abs, tag = 'smem constant byte address 0x4 - core index']
  #allocation1 [shape = 'u32[72,128]{1,0:T(1,128)}', space=vmem, size = 0x9000, scoped, tag = 'internal scratch']
  #allocation2 [shape = 'f32[64,128]{1,0:T(8,128)}', space=vmem, size = 0x8000, scoped, tag = 'scratch operand']
  %s0 = inlined_call_operand.vmem [shape: f32[64,16], index: 0, kind: input, shape index: {}]
  %s1 = inlined_call_operand.vmem [shape: f32[16,128], index: 1, kind: input, shape index: {}]
  %s2 = inlined_call_operand.vmem [shape: f32[32,128], index: 2, kind: input, shape index: {}]
  %s3 = inlined_call_operand.vmem [shape: f32[1,128], index: 3, kind: input, shape index: {}]
  %s4 = inlined_call_operand.vmem [shape: f32[32,128], index: 4, kind: input, shape index: {}]
  %s5 = inlined_call_operand.vmem [shape: f32[1,128], index: 5, kind: input, shape index: {}]
  %s6 = inlined_call_operand.vmem [shape: f32[8,128], index: 6, kind: output, shape index: {}]
  %s7 = sld [smem:[#allocation0]]
  $region34: #{lstm_classifier_forward.1} parent=0
    _
  %s9 = ssub.s32 1, %s7
  %s10 = scalar_select 0, %s9, %s7
  // Predicated region
  $region2: #{lstm_classifier_forward.1} parent=0 // pred_check
    _
  $region3: #{lstm_classifier_forward.1} parent=0 // pred_check_branch
    %12 = sbr.rel (0) target = $region5
  $region4: #{lstm_classifier_forward.1} parent=0 // pred_region
    _
  $region5: #{lstm_classifier_forward.1} parent=0 // pred_fallthru
    _
  // Predicated region
  $region6: #{lstm_classifier_forward.1} parent=0 // pred_check
    _
  $region7: #{lstm_classifier_forward.1} parent=0 // pred_check_branch
    %14 = sbr.rel (0) target = $region9
  $region8: #{lstm_classifier_forward.1} parent=0 // pred_region
    _
  $region9: #{lstm_classifier_forward.1} parent=0 // pred_fallthru
    _
  // Predicated region
  $region10: #{lstm_classifier_forward.1} parent=0 // pred_check
    _
  $region11: #{lstm_classifier_forward.1} parent=0 // pred_check_branch
    %16 = sbr.rel (0) target = $region13
  $region12: #{lstm_classifier_forward.1} parent=0 // pred_region
    _
  $region13: #{lstm_classifier_forward.1} parent=0 // pred_fallthru
    _
  // Predicated region
  $region14: #{lstm_classifier_forward.1} parent=0 // pred_check
    _
  $region15: #{lstm_classifier_forward.1} parent=0 // pred_check_branch
    %18 = sbr.rel (0) target = $region17
  $region16: #{lstm_classifier_forward.1} parent=0 // pred_region
    _
  $region17: #{lstm_classifier_forward.1} parent=0 // pred_fallthru
    _
  // Predicated region
  $region18: #{lstm_classifier_forward.1} parent=0 // pred_check
    _
  $region19: #{lstm_classifier_forward.1} parent=0 // pred_check_branch
    %20 = sbr.rel (0) target = $region21
  $region20: #{lstm_classifier_forward.1} parent=0 // pred_region
    _
  $region21: #{lstm_classifier_forward.1} parent=0 // pred_fallthru
    _
  // Predicated region
  $region22: #{lstm_classifier_forward.1} parent=0 // pred_check
    _
  $region23: #{lstm_classifier_forward.1} parent=0 // pred_check_branch
    %22 = sbr.rel (0) target = $region25
  $region24: #{lstm_classifier_forward.1} parent=0 // pred_region
    _
  $region25: #{lstm_classifier_forward.1} parent=0 // pred_fallthru
    _
  %v23 = vld [vmem:[%s0] sm:$0xff]
  %v24 = vld [vmem:[%s0 + $0x8] sm:$0xff]
  %v25 = vld [vmem:[%s0 + $0x10] sm:$0xff]
  %v26 = vld [vmem:[%s0 + $0x18] sm:$0xff]
  %v27 = vld [vmem:[%s0 + $0x20] sm:$0xff]
  %v28 = vld [vmem:[%s0 + $0x28] sm:$0xff]
  %v29 = vld [vmem:[%s0 + $0x30] sm:$0xff]
  %v30 = vld [vmem:[%s0 + $0x38] sm:$0xff]
  %v31 = vld [vmem:[%s1] sm:$0xff]
  %v32 = vld [vmem:[%s1 + $0x8] sm:$0xff]
  %v33 = vld [vmem:[%s3] sm:$0x1]
  %v35 = vperm.slane %v33, 0
  %vm37 = vcmask 130048
  %v39 = vsel %vm37, %v23, 0
  %v42 = vsel %vm37, %v24, 0
  %v45 = vsel %vm37, %v25, 0
  %v48 = vsel %vm37, %v26, 0
  %v51 = vsel %vm37, %v27, 0
  %v54 = vsel %vm37, %v28, 0
  %v57 = vsel %vm37, %v29, 0
  %v60 = vsel %vm37, %v30, 0
  %62 = vmatpush.msra.mxu0 0.0
  %63 = vmatpush.msra.mxu0 0.0
  %64 = vmatpush.msra.mxu0 0.0
  %65 = vmatpush.msra.mxu0 0.0
  %66 = vmatpush.msra.mxu0 0.0
  %67 = vmatpush.msra.mxu0 0.0
  %68 = vmatpush.msra.mxu0 0.0
  %69 = vmatpush.msra.mxu0 0.0
  %70 = vmatpush.msra.mxu0 0.0
  %71 = vmatpush.msra.mxu0 0.0
  %72 = vmatpush.msra.mxu0 0.0
  %73 = vmatpush.msra.mxu0 0.0
  %74 = vmatpush.msra.mxu0 0.0
  %75 = vmatpush.msra.mxu0 0.0
  %76 = vmatpush.msra.mxu0 %v32
  %77 = vmatpush.msra.mxu0 %v31
  %78 = vmatmul.f32.gmra.mxu0 %v39
  %v79 = vpop.f32.mrf.mxu0
  %v80 = vadd.f32 %v35, %v79
  %81 = vmatmul.f32.gmra.mxu0 %v42
  %v82 = vpop.f32.mrf.mxu0
  %v83 = vadd.f32 %v35, %v82
  %84 = vmatmul.f32.gmra.mxu0 %v45
  %v85 = vpop.f32.mrf.mxu0
  %v86 = vadd.f32 %v35, %v85
  %87 = vmatmul.f32.gmra.mxu0 %v48
  %v88 = vpop.f32.mrf.mxu0
  %v89 = vadd.f32 %v35, %v88
  %90 = vmatmul.f32.gmra.mxu0 %v51
  %v91 = vpop.f32.mrf.mxu0
  %v92 = vadd.f32 %v35, %v91
  %93 = vmatmul.f32.gmra.mxu0 %v54
  %v94 = vpop.f32.mrf.mxu0
  %v95 = vadd.f32 %v35, %v94
  %96 = vmatmul.f32.gmra.mxu0 %v57
  %v97 = vpop.f32.mrf.mxu0
  %v98 = vadd.f32 %v35, %v97
  %99 = vmatmul.f32.gmra.mxu0 %v60
  %v100 = vpop.f32.mrf.mxu0
  %v101 = vadd.f32 %v35, %v100
  %102 = vdwg.mxu0
  %103 = vst [vmem:[#allocation2] sm:$0xff] %v80
  %104 = vst [vmem:[#allocation2 + $0x8] sm:$0xff] %v83
  %105 = vst [vmem:[#allocation2 + $0x10] sm:$0xff] %v86
  %106 = vst [vmem:[#allocation2 + $0x18] sm:$0xff] %v89
  %107 = vst [vmem:[#allocation2 + $0x20] sm:$0xff] %v92
  %108 = vst [vmem:[#allocation2 + $0x28] sm:$0xff] %v95
  %109 = vst [vmem:[#allocation2 + $0x30] sm:$0xff] %v98
  %110 = vst [vmem:[#allocation2 + $0x38] sm:$0xff] %v101
  %v111 = vld [vmem:[%s2] sm:$0xff]
  %v112 = vld [vmem:[%s2 + $0x8] sm:$0xff]
  %v113 = vld [vmem:[%s2 + $0x10] sm:$0xff]
  %v114 = vld [vmem:[%s2 + $0x18] sm:$0xff]
  %v115 = vld [vmem:[#allocation2] sm:$0xff]
  %vm116 = vcmask 261120
  %v118 = vsel %vm116, 0.0, 0
  %120 = vmatpush.msra.mxu0 0.0
  %121 = vmatpush.msra.mxu0 0.0
  %122 = vmatpush.msra.mxu0 0.0
  %123 = vmatpush.msra.mxu0 0.0
  %124 = vmatpush.msra.mxu0 0.0
  %125 = vmatpush.msra.mxu0 0.0
  %126 = vmatpush.msra.mxu0 0.0
  %127 = vmatpush.msra.mxu0 0.0
  %128 = vmatpush.msra.mxu0 0.0
  %129 = vmatpush.msra.mxu0 0.0
  %130 = vmatpush.msra.mxu0 0.0
  %131 = vmatpush.msra.mxu0 0.0
  %132 = vmatpush.msra.mxu0 %v114
  %133 = vmatpush.msra.mxu0 %v113
  %134 = vmatpush.msra.mxu0 %v112
  %135 = vmatpush.msra.mxu0 %v111
  %136 = vmatmul.f32.gmra.mxu0 %v118
  %v137 = vpop.f32.mrf.mxu0
  %v138 = vadd.f32 0.0, %v137
  %139 = vdwg.mxu0
  %v140 = vadd.f32 %v115, %v138
  %v141 = vtanh.pop %v140
  %v142 = vadd.f32 %v141, 1.0
  %v143 = vmul.f32 %v142, 0.5
  %v144 = vmul.f32 %v143, 0.0
  %146 = vrot.lane.b32.xlu0 %v141, 64
  %v147 = vpop.permute.xlu0 %146
  %v149 = vmul.f32 %v143, %v147
  %151 = vrot.lane.b32.xlu0 %v149, 32
  %v152 = vpop.permute.xlu0 %151
  %v154 = vadd.f32 %v144, %v152
  %v155 = vtanh.pop %v154
  %157 = vrot.lane.b32.xlu0 %v155, 64
  %v158 = vpop.permute.xlu0 %157
  %v160 = vmul.f32 %v143, %v158
  %s161 = scalar_lea.vmem [#allocation2], 8
  %v162 = vld [vmem:[%s161] sm:$0xff]
  %164 = vrot.lane.b32.xlu0 %v160, 32
  %v165 = vpop.permute.xlu0 %164
  %v166 = vsel %vm116, %v165, 0
  %168 = vmatpush.msra.mxu0 0.0
  %169 = vmatpush.msra.mxu0 0.0
  %170 = vmatpush.msra.mxu0 0.0
  %171 = vmatpush.msra.mxu0 0.0
  %172 = vmatpush.msra.mxu0 0.0
  %173 = vmatpush.msra.mxu0 0.0
  %174 = vmatpush.msra.mxu0 0.0
  %175 = vmatpush.msra.mxu0 0.0
  %176 = vmatpush.msra.mxu0 0.0
  %177 = vmatpush.msra.mxu0 0.0
  %178 = vmatpush.msra.mxu0 0.0
  %179 = vmatpush.msra.mxu0 0.0
  %180 = vmatpush.msra.mxu0 %v114
  %181 = vmatpush.msra.mxu0 %v113
  %182 = vmatpush.msra.mxu0 %v112
  %183 = vmatpush.msra.mxu0 %v111
  %184 = vmatmul.f32.gmra.mxu0 %v166
  %v185 = vpop.f32.mrf.mxu0
  %v186 = vadd.f32 0.0, %v185
  %187 = vdwg.mxu0
  %v188 = vadd.f32 %v162, %v186
  %v189 = vtanh.pop %v188
  %v190 = vadd.f32 %v189, 1.0
  %v191 = vmul.f32 %v190, 0.5
  %v192 = vmul.f32 %v191, %v154
  %194 = vrot.lane.b32.xlu0 %v189, 64
  %v195 = vpop.permute.xlu0 %194
  %v197 = vmul.f32 %v191, %v195
  %199 = vrot.lane.b32.xlu0 %v197, 32
  %v200 = vpop.permute.xlu0 %199
  %v202 = vadd.f32 %v192, %v200
  %v203 = vtanh.pop %v202
  %205 = vrot.lane.b32.xlu0 %v203, 64
  %v206 = vpop.permute.xlu0 %205
  %v208 = vmul.f32 %v191, %v206
  %s209 = scalar_lea.vmem [#allocation2], 16
  %v210 = vld [vmem:[%s209] sm:$0xff]
  %212 = vrot.lane.b32.xlu0 %v208, 32
  %v213 = vpop.permute.xlu0 %212
  %v214 = vsel %vm116, %v213, 0
  %216 = vmatpush.msra.mxu0 0.0
  %217 = vmatpush.msra.mxu0 0.0
  %218 = vmatpush.msra.mxu0 0.0
  %219 = vmatpush.msra.mxu0 0.0
  %220 = vmatpush.msra.mxu0 0.0
  %221 = vmatpush.msra.mxu0 0.0
  %222 = vmatpush.msra.mxu0 0.0
  %223 = vmatpush.msra.mxu0 0.0
  %224 = vmatpush.msra.mxu0 0.0
  %225 = vmatpush.msra.mxu0 0.0
  %226 = vmatpush.msra.mxu0 0.0
  %227 = vmatpush.msra.mxu0 0.0
  %228 = vmatpush.msra.mxu0 %v114
  %229 = vmatpush.msra.mxu0 %v113
  %230 = vmatpush.msra.mxu0 %v112
  %231 = vmatpush.msra.mxu0 %v111
  %232 = vmatmul.f32.gmra.mxu0 %v214
  %v233 = vpop.f32.mrf.mxu0
  %v234 = vadd.f32 0.0, %v233
  %235 = vdwg.mxu0
  %v236 = vadd.f32 %v210, %v234
  %v237 = vtanh.pop %v236
  %v238 = vadd.f32 %v237, 1.0
  %v239 = vmul.f32 %v238, 0.5
  %v240 = vmul.f32 %v239, %v202
  %242 = vrot.lane.b32.xlu0 %v237, 64
  %v243 = vpop.permute.xlu0 %242
  %v245 = vmul.f32 %v239, %v243
  %247 = vrot.lane.b32.xlu0 %v245, 32
  %v248 = vpop.permute.xlu0 %247
  %v250 = vadd.f32 %v240, %v248
  %v251 = vtanh.pop %v250
  %253 = vrot.lane.b32.xlu0 %v251, 64
  %v254 = vpop.permute.xlu0 %253
  %v256 = vmul.f32 %v239, %v254
  %s257 = scalar_lea.vmem [#allocation2], 24
  %v258 = vld [vmem:[%s257] sm:$0xff]
  %260 = vrot.lane.b32.xlu0 %v256, 32
  %v261 = vpop.permute.xlu0 %260
  %v262 = vsel %vm116, %v261, 0
  %264 = vmatpush.msra.mxu0 0.0
  %265 = vmatpush.msra.mxu0 0.0
  %266 = vmatpush.msra.mxu0 0.0
  %267 = vmatpush.msra.mxu0 0.0
  %268 = vmatpush.msra.mxu0 0.0
  %269 = vmatpush.msra.mxu0 0.0
  %270 = vmatpush.msra.mxu0 0.0
  %271 = vmatpush.msra.mxu0 0.0
  %272 = vmatpush.msra.mxu0 0.0
  %273 = vmatpush.msra.mxu0 0.0
  %274 = vmatpush.msra.mxu0 0.0
  %275 = vmatpush.msra.mxu0 0.0
  %276 = vmatpush.msra.mxu0 %v114
  %277 = vmatpush.msra.mxu0 %v113
  %278 = vmatpush.msra.mxu0 %v112
  %279 = vmatpush.msra.mxu0 %v111
  %280 = vmatmul.f32.gmra.mxu0 %v262
  %v281 = vpop.f32.mrf.mxu0
  %v282 = vadd.f32 0.0, %v281
  %283 = vdwg.mxu0
  %v284 = vadd.f32 %v258, %v282
  %v285 = vtanh.pop %v284
  %v286 = vadd.f32 %v285, 1.0
  %v287 = vmul.f32 %v286, 0.5
  %v288 = vmul.f32 %v287, %v250
  %290 = vrot.lane.b32.xlu0 %v285, 64
  %v291 = vpop.permute.xlu0 %290
  %v293 = vmul.f32 %v287, %v291
  %295 = vrot.lane.b32.xlu0 %v293, 32
  %v296 = vpop.permute.xlu0 %295
  %v298 = vadd.f32 %v288, %v296
  %v299 = vtanh.pop %v298
  %301 = vrot.lane.b32.xlu0 %v299, 64
  %v302 = vpop.permute.xlu0 %301
  %v304 = vmul.f32 %v287, %v302
  %s305 = scalar_lea.vmem [#allocation2], 32
  %v306 = vld [vmem:[%s305] sm:$0xff]
  %308 = vrot.lane.b32.xlu0 %v304, 32
  %v309 = vpop.permute.xlu0 %308
  %v310 = vsel %vm116, %v309, 0
  %312 = vmatpush.msra.mxu0 0.0
  %313 = vmatpush.msra.mxu0 0.0
  %314 = vmatpush.msra.mxu0 0.0
  %315 = vmatpush.msra.mxu0 0.0
  %316 = vmatpush.msra.mxu0 0.0
  %317 = vmatpush.msra.mxu0 0.0
  %318 = vmatpush.msra.mxu0 0.0
  %319 = vmatpush.msra.mxu0 0.0
  %320 = vmatpush.msra.mxu0 0.0
  %321 = vmatpush.msra.mxu0 0.0
  %322 = vmatpush.msra.mxu0 0.0
  %323 = vmatpush.msra.mxu0 0.0
  %324 = vmatpush.msra.mxu0 %v114
  %325 = vmatpush.msra.mxu0 %v113
  %326 = vmatpush.msra.mxu0 %v112
  %327 = vmatpush.msra.mxu0 %v111
  %328 = vmatmul.f32.gmra.mxu0 %v310
  %v329 = vpop.f32.mrf.mxu0
  %v330 = vadd.f32 0.0, %v329
  %331 = vdwg.mxu0
  %v332 = vadd.f32 %v306, %v330
  %v333 = vtanh.pop %v332
  %v334 = vadd.f32 %v333, 1.0
  %v335 = vmul.f32 %v334, 0.5
  %v336 = vmul.f32 %v335, %v298
  %338 = vrot.lane.b32.xlu0 %v333, 64
  %v339 = vpop.permute.xlu0 %338
  %v341 = vmul.f32 %v335, %v339
  %343 = vrot.lane.b32.xlu0 %v341, 32
  %v344 = vpop.permute.xlu0 %343
  %v346 = vadd.f32 %v336, %v344
  %v347 = vtanh.pop %v346
  %349 = vrot.lane.b32.xlu0 %v347, 64
  %v350 = vpop.permute.xlu0 %349
  %v352 = vmul.f32 %v335, %v350
  %s353 = scalar_lea.vmem [#allocation2], 40
  %v354 = vld [vmem:[%s353] sm:$0xff]
  %356 = vrot.lane.b32.xlu0 %v352, 32
  %v357 = vpop.permute.xlu0 %356
  %v358 = vsel %vm116, %v357, 0
  %360 = vmatpush.msra.mxu0 0.0
  %361 = vmatpush.msra.mxu0 0.0
  %362 = vmatpush.msra.mxu0 0.0
  %363 = vmatpush.msra.mxu0 0.0
  %364 = vmatpush.msra.mxu0 0.0
  %365 = vmatpush.msra.mxu0 0.0
  %366 = vmatpush.msra.mxu0 0.0
  %367 = vmatpush.msra.mxu0 0.0
  %368 = vmatpush.msra.mxu0 0.0
  %369 = vmatpush.msra.mxu0 0.0
  %370 = vmatpush.msra.mxu0 0.0
  %371 = vmatpush.msra.mxu0 0.0
  %372 = vmatpush.msra.mxu0 %v114
  %373 = vmatpush.msra.mxu0 %v113
  %374 = vmatpush.msra.mxu0 %v112
  %375 = vmatpush.msra.mxu0 %v111
  %376 = vmatmul.f32.gmra.mxu0 %v358
  %v377 = vpop.f32.mrf.mxu0
  %v378 = vadd.f32 0.0, %v377
  %379 = vdwg.mxu0
  %v380 = vadd.f32 %v354, %v378
  %v381 = vtanh.pop %v380
  %v382 = vadd.f32 %v381, 1.0
  %v383 = vmul.f32 %v382, 0.5
  %v384 = vmul.f32 %v383, %v346
  %386 = vrot.lane.b32.xlu0 %v381, 64
  %v387 = vpop.permute.xlu0 %386
  %v389 = vmul.f32 %v383, %v387
  %391 = vrot.lane.b32.xlu0 %v389, 32
  %v392 = vpop.permute.xlu0 %391
  %v394 = vadd.f32 %v384, %v392
  %v395 = vtanh.pop %v394
  %397 = vrot.lane.b32.xlu0 %v395, 64
  %v398 = vpop.permute.xlu0 %397
  %v400 = vmul.f32 %v383, %v398
  %s401 = scalar_lea.vmem [#allocation2], 48
  %v402 = vld [vmem:[%s401] sm:$0xff]
  %404 = vrot.lane.b32.xlu0 %v400, 32
  %v405 = vpop.permute.xlu0 %404
  %v406 = vsel %vm116, %v405, 0
  %408 = vmatpush.msra.mxu0 0.0
  %409 = vmatpush.msra.mxu0 0.0
  %410 = vmatpush.msra.mxu0 0.0
  %411 = vmatpush.msra.mxu0 0.0
  %412 = vmatpush.msra.mxu0 0.0
  %413 = vmatpush.msra.mxu0 0.0
  %414 = vmatpush.msra.mxu0 0.0
  %415 = vmatpush.msra.mxu0 0.0
  %416 = vmatpush.msra.mxu0 0.0
  %417 = vmatpush.msra.mxu0 0.0
  %418 = vmatpush.msra.mxu0 0.0
  %419 = vmatpush.msra.mxu0 0.0
  %420 = vmatpush.msra.mxu0 %v114
  %421 = vmatpush.msra.mxu0 %v113
  %422 = vmatpush.msra.mxu0 %v112
  %423 = vmatpush.msra.mxu0 %v111
  %424 = vmatmul.f32.gmra.mxu0 %v406
  %v425 = vpop.f32.mrf.mxu0
  %v426 = vadd.f32 0.0, %v425
  %427 = vdwg.mxu0
  %v428 = vadd.f32 %v402, %v426
  %v429 = vtanh.pop %v428
  %v430 = vadd.f32 %v429, 1.0
  %v431 = vmul.f32 %v430, 0.5
  %v432 = vmul.f32 %v431, %v394
  %434 = vrot.lane.b32.xlu0 %v429, 64
  %v435 = vpop.permute.xlu0 %434
  %v437 = vmul.f32 %v431, %v435
  %439 = vrot.lane.b32.xlu0 %v437, 32
  %v440 = vpop.permute.xlu0 %439
  %v442 = vadd.f32 %v432, %v440
  %v443 = vtanh.pop %v442
  %445 = vrot.lane.b32.xlu0 %v443, 64
  %v446 = vpop.permute.xlu0 %445
  %v448 = vmul.f32 %v431, %v446
  %s449 = scalar_lea.vmem [#allocation2], 56
  %v450 = vld [vmem:[%s449] sm:$0xff]
  %452 = vrot.lane.b32.xlu0 %v448, 32
  %v453 = vpop.permute.xlu0 %452
  %v454 = vsel %vm116, %v453, 0
  %456 = vmatpush.msra.mxu0 0.0
  %457 = vmatpush.msra.mxu0 0.0
  %458 = vmatpush.msra.mxu0 0.0
  %459 = vmatpush.msra.mxu0 0.0
  %460 = vmatpush.msra.mxu0 0.0
  %461 = vmatpush.msra.mxu0 0.0
  %462 = vmatpush.msra.mxu0 0.0
  %463 = vmatpush.msra.mxu0 0.0
  %464 = vmatpush.msra.mxu0 0.0
  %465 = vmatpush.msra.mxu0 0.0
  %466 = vmatpush.msra.mxu0 0.0
  %467 = vmatpush.msra.mxu0 0.0
  %468 = vmatpush.msra.mxu0 %v114
  %469 = vmatpush.msra.mxu0 %v113
  %470 = vmatpush.msra.mxu0 %v112
  %471 = vmatpush.msra.mxu0 %v111
  %472 = vmatmul.f32.gmra.mxu0 %v454
  %v473 = vpop.f32.mrf.mxu0
  %v474 = vadd.f32 0.0, %v473
  %475 = vdwg.mxu0
  %v476 = vadd.f32 %v450, %v474
  %v477 = vtanh.pop %v476
  %v478 = vadd.f32 %v477, 1.0
  %v479 = vmul.f32 %v478, 0.5
  %v480 = vmul.f32 %v479, %v442
  %482 = vrot.lane.b32.xlu0 %v477, 64
  %v483 = vpop.permute.xlu0 %482
  %v485 = vmul.f32 %v479, %v483
  %487 = vrot.lane.b32.xlu0 %v485, 32
  %v488 = vpop.permute.xlu0 %487
  %v490 = vadd.f32 %v480, %v488
  %v491 = vtanh.pop %v490
  %493 = vrot.lane.b32.xlu0 %v491, 64
  %v494 = vpop.permute.xlu0 %493
  %v496 = vmul.f32 %v479, %v494
  %v497 = vld [vmem:[%s4] sm:$0xff]
  %v498 = vld [vmem:[%s4 + $0x8] sm:$0xff]
  %v499 = vld [vmem:[%s4 + $0x10] sm:$0xff]
  %v500 = vld [vmem:[%s4 + $0x18] sm:$0xff]
  %v501 = vld [vmem:[%s5] sm:$0x1]
  %v503 = vperm.slane %v501, 0
  %506 = vrot.lane.b32.xlu0 %v496, 32
  %v507 = vpop.permute.xlu0 %506
  %v508 = vsel %vm116, %v507, 0
  %510 = vmatpush.msra.mxu0 0.0
  %511 = vmatpush.msra.mxu0 0.0
  %512 = vmatpush.msra.mxu0 0.0
  %513 = vmatpush.msra.mxu0 0.0
  %514 = vmatpush.msra.mxu0 0.0
  %515 = vmatpush.msra.mxu0 0.0
  %516 = vmatpush.msra.mxu0 0.0
  %517 = vmatpush.msra.mxu0 0.0
  %518 = vmatpush.msra.mxu0 0.0
  %519 = vmatpush.msra.mxu0 0.0
  %520 = vmatpush.msra.mxu0 0.0
  %521 = vmatpush.msra.mxu0 0.0
  %522 = vmatpush.msra.mxu0 %v500
  %523 = vmatpush.msra.mxu0 %v499
  %524 = vmatpush.msra.mxu0 %v498
  %525 = vmatpush.msra.mxu0 %v497
  %526 = vmatmul.f32.gmra.mxu0 %v508
  %v527 = vpop.f32.mrf.mxu0
  %v528 = vadd.f32 %v503, %v527
  %529 = vdwg.mxu0
  %v530 = vxor.u32 %v528, 2147483648
  %v531 = vmul.f32 %v530, 1.442695
  %v532 = vpow.pop %v531
  %v533 = vadd.f32 %v532, 1.0
  %v534 = vrcp.pop %v533
  %v535 = vmul.f32 %v533, %v534
  %v536 = vsub.f32 1.0, %v535
  %v537 = vmul.f32 %v534, %v536
  %v538 = vadd.f32 %v534, %v537
  %vm539 = vweird.f32 %v533
  %vm540 = vweird.f32 %v534
  %vm541 = vmor %vm539, %vm540
  %v542 = vsel %vm541, %v534, %v538
  %v543 = vand.u32 2147483647, %v533
  %vm544 = vcmp.eq.f32.partialorder %v543, 8.507059e+37
  %v545 = vand.u32 %v533, 2147483648
  %v546 = vor.u32 1.1754944e-38, %v545
  %v547 = vsel %vm544, %v546, %v542
  %v548 = vmul.f32 1.0, %v547
  %549 = vst [vmem:[%s6] sm:$0xff] %v548
  // Predicated region
  $region26: #{lstm_classifier_forward.1} parent=0 // pred_check
    _
  $region27: #{lstm_classifier_forward.1} parent=0 // pred_check_branch
    %551 = sbr.rel (0) target = $region29
  $region28: #{lstm_classifier_forward.1} parent=0 // pred_region
    _
  $region29: #{lstm_classifier_forward.1} parent=0 // pred_fallthru
    _
  // Predicated region
  $region30: #{lstm_classifier_forward.1} parent=0 // pred_check
    _
  $region31: #{lstm_classifier_forward.1} parent=0 // pred_check_branch
    %553 = sbr.rel (0) target = $region33
  $region32: #{lstm_classifier_forward.1} parent=0 // pred_region
    _
  $region33: #{lstm_classifier_forward.1} parent=0 // pred_fallthru
    _

</llo_original>
